<compile_context>
chip_gen: v6e
topology: v6e:2x2x1
jax: 0.10.0
libtpu: 0.0.40
codegen_flags: <defaults>
</compile_context>

<pallas_src>
import functools

import jax
import jax.numpy as jnp
from jax.experimental import pallas as pl
from jax.experimental.pallas import tpu as pltpu

LANE = 128  # lane width; hidden/output feature dims are zero-padded to this


def mlp_kernel(x_ref, w1_ref, w_ref, b_ref, o_ref):
    # x_ref : (TB, OBS)      f32   (cast to bf16 in-register)
    # w1_ref: (OBS, LANE)    bf16  (layer-1 weight, resident)
    # w_ref : (2, LANE, LANE) bf16 (layer-2/3 weights, resident)
    # b_ref : (3, 1, LANE)   f32   (biases, resident)
    # o_ref : (TB, LANE)     bf16  (lane-dense Q-value store)
    x = x_ref[...].astype(jnp.bfloat16)
    # Layer 1: Linear + ReLU (bf16 MXU operands, f32 accumulate, f32 epilogue)
    h = jnp.dot(x, w1_ref[...], preferred_element_type=jnp.float32)
    h = jnp.maximum(h + b_ref[0], 0.0).astype(jnp.bfloat16)
    # Layer 2: Linear + ReLU
    h = jnp.dot(h, w_ref[0], preferred_element_type=jnp.float32)
    h = jnp.maximum(h + b_ref[1], 0.0).astype(jnp.bfloat16)
    # Layer 3: Linear ('none' activation -> Q-values)
    q = jnp.dot(h, w_ref[1], preferred_element_type=jnp.float32)
    o_ref[...] = (q + b_ref[2]).astype(o_ref.dtype)


def _round_up(x, m):
    return ((x + m - 1) // m) * m


def _pad_to(a, shape):
    pads = [(0, t - s) for s, t in zip(a.shape, shape)]
    return jnp.pad(a, pads)


def pack_params(params):
    """One-time parameter packing (keep OUT of the per-step hot path).

    params: w1 (OBS,H1), b1 (1,H1), w2 (H1,H2), b2 (1,H2), w3 (H2,N_ACT),
            b3 (1,N_ACT); weights already stored as (in, out).
    """
    w1, b1 = params["w1"], params["b1"]
    w2, b2 = params["w2"], params["b2"]
    w3, b3 = params["w3"], params["b3"]
    obs, h1 = w1.shape
    h2, n_act = w3.shape[0], w3.shape[1]
    assert w2.shape == (h1, h2)
    assert max(h1, h2, n_act) <= LANE, "hidden/action dims must fit in 128 lanes"

    w1_p = _pad_to(w1, (obs, LANE)).astype(jnp.bfloat16)           # (OBS, LANE)
    w_slab = jnp.stack([
        _pad_to(w2, (LANE, LANE)),
        _pad_to(w3, (LANE, LANE)),
    ]).astype(jnp.bfloat16)                                        # (2, LANE, LANE)
    b_slab = jnp.stack([
        _pad_to(b1, (1, LANE)),
        _pad_to(b2, (1, LANE)),
        _pad_to(b3, (1, LANE)),
    ]).astype(jnp.float32)                                         # (3, 1, LANE)
    return {"w1": w1_p, "w": w_slab, "b": b_slab, "n_act": int(n_act)}


@functools.partial(jax.jit, static_argnames=("n_act", "tb"))
def _dqn_forward_impl(x, w1_p, w_slab, b_slab, *, n_act, tb):
    B, obs = x.shape
    assert obs == w1_p.shape[0]

    if tb is None:
        # Largest batch tile that keeps >= 2 grid steps (both v7x TCs busy),
        # multiple of 16 (bf16 output sublane packing), capped at 1024.
        tb = max(16, min(1024, _round_up((B + 1) // 2, 16)))
    bp = _round_up(B, tb)
    x_p = x if bp == B else jnp.pad(x, ((0, bp - B), (0, 0)))

    grid = (bp // tb,)
    out = pl.pallas_call(
        mlp_kernel,
        out_shape=jax.ShapeDtypeStruct((bp, LANE), jnp.bfloat16),
        grid=grid,
        in_specs=[
            # x tile: raw f32, last block dim == full array dim (obs)
            pl.BlockSpec((tb, obs), lambda i: (i, 0)),
            # resident params: constant index_map, single-buffered
            pl.BlockSpec((obs, LANE), lambda i: (0, 0),
                         pipeline_mode=pl.Buffered(1)),
            pl.BlockSpec((2, LANE, LANE), lambda i: (0, 0, 0),
                         pipeline_mode=pl.Buffered(1)),
            pl.BlockSpec((3, 1, LANE), lambda i: (0, 0, 0),
                         pipeline_mode=pl.Buffered(1)),
        ],
        out_specs=pl.BlockSpec((tb, LANE), lambda i: (i, 0)),
        compiler_params=pltpu.CompilerParams(
            dimension_semantics=("parallel",)),
    )(x_p, w1_p, w_slab, b_slab)

    # Slice away batch/lane padding (tiny), return f32 Q-values like the
    # PyTorch module.
    return out[:B, :n_act].astype(jnp.float32)


def dqn_forward(x, packed, *, tb=None):
    """x: (B, OBS) float32; packed: output of pack_params()."""
    return _dqn_forward_impl(x, packed["w1"], packed["w"], packed["b"],
                             n_act=packed["n_act"], tb=tb)


def init_linear(key, fan_in, fan_out):
    """PyTorch nn.Linear-style init: U(-1/sqrt(fan_in), 1/sqrt(fan_in)).
    Weight returned already transposed to (in, out); bias as (1, out)."""
    kw, kb = jax.random.split(key)
    bound = 1.0 / jnp.sqrt(jnp.float32(fan_in))
    w = jax.random.uniform(kw, (fan_in, fan_out), jnp.float32, -bound, bound)
    b = jax.random.uniform(kb, (1, fan_out), jnp.float32, -bound, bound)
    return w, b


if __name__ == "__main__":
    # DQN-head-like shapes: obs_dim=8, hidden=32, n_actions=4, batch=256.
    # Auto tile -> tb=128 -> 2 grid steps (exercises the batch grid / v7x split).
    OBS, H1, H2, N_ACT, BATCH = 8, 32, 32, 4, 256

    key = jax.random.PRNGKey(0)
    k_x, k1, k2, k3 = jax.random.split(key, 4)

    x = jax.random.normal(k_x, (BATCH, OBS), jnp.float32)
    w1, b1 = init_linear(k1, OBS, H1)
    w2, b2 = init_linear(k2, H1, H2)
    w3, b3 = init_linear(k3, H2, N_ACT)
    params = {"w1": w1, "b1": b1, "w2": w2, "b2": b2, "w3": w3, "b3": b3}

    packed = pack_params(params)          # one-time packing, out of hot path
    q_values = dqn_forward(x, packed)
    jax.block_until_ready(q_values)
    assert q_values.shape == (BATCH, N_ACT)
    assert q_values.dtype == jnp.float32

    # Pure-JAX reference with matching bf16-operand / f32-accumulate semantics.
    xb = x.astype(jnp.bfloat16)
    h = jnp.maximum(jnp.dot(xb, w1.astype(jnp.bfloat16),
                            preferred_element_type=jnp.float32) + b1, 0.0)
    h = jnp.maximum(jnp.dot(h.astype(jnp.bfloat16), w2.astype(jnp.bfloat16),
                            preferred_element_type=jnp.float32) + b2, 0.0)
    ref = jnp.dot(h.astype(jnp.bfloat16), w3.astype(jnp.bfloat16),
                  preferred_element_type=jnp.float32) + b3
    assert jnp.allclose(q_values, ref, atol=2e-2, rtol=2e-2)

    # Sanity against the exact f32 PyTorch semantics (looser tol, bf16 path).
    ref32 = jnp.maximum(x @ w1 + b1, 0.0)
    ref32 = jnp.maximum(ref32 @ w2 + b2, 0.0)
    ref32 = ref32 @ w3 + b3
    assert jnp.allclose(q_values, ref32, atol=5e-2, rtol=5e-2)

    # TODO(synk): build_model's 'tanh'/'scaling'/'onehot'/'embed' layer variants
    # are not part of this DQN linear+relu head and are not implemented here.

    print("KERNEL_OK")
</pallas_src>

<mosaic_0001>
module attributes {stable_mosaic.version = 11 : i64} {
  func.func @mlp_kernel(%arg0: i32, %arg1: memref<128x8xf32, #tpu.memory_space<vmem>>, %arg2: memref<8x128xbf16, #tpu.memory_space<vmem>>, %arg3: memref<2x128x128xbf16, #tpu.memory_space<vmem>>, %arg4: memref<3x1x128xf32, #tpu.memory_space<vmem>>, %arg5: memref<128x128xbf16, #tpu.memory_space<vmem>>) attributes {dimension_semantics = [#tpu.dimension_semantics<parallel>], iteration_bounds = array<i64: 2>, scalar_prefetch = 0 : i64, scratch_operands = 0 : i64, tpu.core_type = #tpu.core_type<tc>, window_params = [{transform_indices = @transform_0, window_bounds = array<i64: 128, 8>}, {pipeline_mode = #tpu.pipeline_mode<synchronous>, transform_indices = @transform_1, window_bounds = array<i64: 8, 128>}, {pipeline_mode = #tpu.pipeline_mode<synchronous>, transform_indices = @transform_2, window_bounds = array<i64: 2, 128, 128>}, {pipeline_mode = #tpu.pipeline_mode<synchronous>, transform_indices = @transform_3, window_bounds = array<i64: 3, 1, 128>}, {transform_indices = @transform_4, window_bounds = array<i64: 128, 128>}]} {
    %c0 = arith.constant 0 : index
    %c0_0 = arith.constant 0 : index
    %0 = vector.load %arg1[%c0, %c0_0] : memref<128x8xf32, #tpu.memory_space<vmem>>, vector<128x8xf32>
    %1 = arith.truncf %0 : vector<128x8xf32> to vector<128x8xbf16>
    %c0_1 = arith.constant 0 : index
    %c0_2 = arith.constant 0 : index
    %2 = vector.load %arg2[%c0_1, %c0_2] : memref<8x128xbf16, #tpu.memory_space<vmem>>, vector<8x128xbf16>
    %cst = arith.constant dense<0.000000e+00> : vector<128x128xf32>
    %3 = tpu.matmul %1, %2, %cst {dimension_numbers = #tpu.dot_dimension_numbers<[1], [0], [0], [1], [0, 0, 1, 1], [], []>} : vector<128x8xbf16>, vector<8x128xbf16>, vector<128x128xf32> -> vector<128x128xf32>
    %c0_3 = arith.constant 0 : index
    %c0_4 = arith.constant 0 : index
    %c0_5 = arith.constant 0 : index
    %4 = vector.load %arg4[%c0_3, %c0_4, %c0_5] : memref<3x1x128xf32, #tpu.memory_space<vmem>>, vector<1x1x128xf32>
    %5 = vector.shape_cast %4 : vector<1x1x128xf32> to vector<1x128xf32>
    %6 = vector.broadcast %5 : vector<1x128xf32> to vector<128x128xf32>
    %7 = arith.addf %3, %6 : vector<128x128xf32>
    %cst_6 = arith.constant 0.000000e+00 : f32
    %8 = vector.broadcast %cst_6 : f32 to vector<128x128xf32>
    %9 = arith.maximumf %7, %8 : vector<128x128xf32>
    %10 = arith.truncf %9 : vector<128x128xf32> to vector<128x128xbf16>
    %c0_7 = arith.constant 0 : index
    %c0_8 = arith.constant 0 : index
    %c0_9 = arith.constant 0 : index
    %11 = vector.load %arg3[%c0_7, %c0_8, %c0_9] : memref<2x128x128xbf16, #tpu.memory_space<vmem>>, vector<1x128x128xbf16>
    %12 = vector.shape_cast %11 : vector<1x128x128xbf16> to vector<128x128xbf16>
    %cst_10 = arith.constant dense<0.000000e+00> : vector<128x128xf32>
    %13 = tpu.matmul %10, %12, %cst_10 {dimension_numbers = #tpu.dot_dimension_numbers<[1], [0], [0], [1], [0, 0, 1, 1], [], []>} : vector<128x128xbf16>, vector<128x128xbf16>, vector<128x128xf32> -> vector<128x128xf32>
    %c1 = arith.constant 1 : index
    %c0_11 = arith.constant 0 : index
    %c0_12 = arith.constant 0 : index
    %14 = vector.load %arg4[%c1, %c0_11, %c0_12] : memref<3x1x128xf32, #tpu.memory_space<vmem>>, vector<1x1x128xf32>
    %15 = vector.shape_cast %14 : vector<1x1x128xf32> to vector<1x128xf32>
    %16 = vector.broadcast %15 : vector<1x128xf32> to vector<128x128xf32>
    %17 = arith.addf %13, %16 : vector<128x128xf32>
    %cst_13 = arith.constant 0.000000e+00 : f32
    %18 = vector.broadcast %cst_13 : f32 to vector<128x128xf32>
    %19 = arith.maximumf %17, %18 : vector<128x128xf32>
    %20 = arith.truncf %19 : vector<128x128xf32> to vector<128x128xbf16>
    %c1_14 = arith.constant 1 : index
    %c0_15 = arith.constant 0 : index
    %c0_16 = arith.constant 0 : index
    %21 = vector.load %arg3[%c1_14, %c0_15, %c0_16] : memref<2x128x128xbf16, #tpu.memory_space<vmem>>, vector<1x128x128xbf16>
    %22 = vector.shape_cast %21 : vector<1x128x128xbf16> to vector<128x128xbf16>
    %cst_17 = arith.constant dense<0.000000e+00> : vector<128x128xf32>
    %23 = tpu.matmul %20, %22, %cst_17 {dimension_numbers = #tpu.dot_dimension_numbers<[1], [0], [0], [1], [0, 0, 1, 1], [], []>} : vector<128x128xbf16>, vector<128x128xbf16>, vector<128x128xf32> -> vector<128x128xf32>
    %c2 = arith.constant 2 : index
    %c0_18 = arith.constant 0 : index
    %c0_19 = arith.constant 0 : index
    %24 = vector.load %arg4[%c2, %c0_18, %c0_19] : memref<3x1x128xf32, #tpu.memory_space<vmem>>, vector<1x1x128xf32>
    %25 = vector.shape_cast %24 : vector<1x1x128xf32> to vector<1x128xf32>
    %26 = vector.broadcast %25 : vector<1x128xf32> to vector<128x128xf32>
    %27 = arith.addf %23, %26 : vector<128x128xf32>
    %28 = arith.truncf %27 : vector<128x128xf32> to vector<128x128xbf16>
    %c0_20 = arith.constant 0 : index
    %c0_21 = arith.constant 0 : index
    %29 = vector.load %arg5[%c0_20, %c0_21] : memref<128x128xbf16, #tpu.memory_space<vmem>>, vector<128x128xbf16>
    tpu.vector_store %arg5[%c0_20, %c0_21], %28 {strides = array<i32>} : memref<128x128xbf16, #tpu.memory_space<vmem>>, vector<128x128xbf16>,
    return
  }
  func.func @transform_0(%arg0: i32) -> (i32, i32) {
    %c0_i32 = arith.constant 0 : i32
    %c0_i32_0 = arith.constant 0 : i32
    return %arg0, %c0_i32 : i32, i32
  }
  func.func @transform_1(%arg0: i32) -> (i32, i32) {
    %c0_i32 = arith.constant 0 : i32
    %c0_i32_0 = arith.constant 0 : i32
    %c0_i32_1 = arith.constant 0 : i32
    return %c0_i32, %c0_i32_0 : i32, i32
  }
  func.func @transform_2(%arg0: i32) -> (i32, i32, i32) {
    %c0_i32 = arith.constant 0 : i32
    %c0_i32_0 = arith.constant 0 : i32
    %c0_i32_1 = arith.constant 0 : i32
    %c0_i32_2 = arith.constant 0 : i32
    return %c0_i32, %c0_i32_0, %c0_i32_1 : i32, i32, i32
  }
  func.func @transform_3(%arg0: i32) -> (i32, i32, i32) {
    %c0_i32 = arith.constant 0 : i32
    %c0_i32_0 = arith.constant 0 : i32
    %c0_i32_1 = arith.constant 0 : i32
    %c0_i32_2 = arith.constant 0 : i32
    return %c0_i32, %c0_i32_0, %c0_i32_1 : i32, i32, i32
  }
  func.func @transform_4(%arg0: i32) -> (i32, i32) {
    %c0_i32 = arith.constant 0 : i32
    %c0_i32_0 = arith.constant 0 : i32
    return %arg0, %c0_i32 : i32, i32
  }
}

</mosaic_0001>

<llo_original>
// kernel: _dqn_forward_impl.1
$region0: #{_dqn_forward_impl.1}
  #allocation0 [shape = 'u32[]', space=smem, size = 0x4, offset = 0x4, fixed_abs, tag = 'smem constant byte address 0x4 - core index']
  #allocation1 [shape = 'u32[144,128]{1,0:T(1,128)}', space=vmem, size = 0x12000, scoped, tag = 'internal scratch']
  %s0 = inlined_call_operand.vmem [shape: f32[256,8], index: 0, kind: input, shape index: {}]
  %s1 = inlined_call_operand.vmem [shape: bf16[8,128], index: 1, kind: input, shape index: {}]
  %s2 = inlined_call_operand.vmem [shape: bf16[2,128,128], index: 2, kind: input, shape index: {}]
  %s3 = inlined_call_operand.vmem [shape: f32[3,1,128], index: 3, kind: input, shape index: {}]
  %s4 = inlined_call_operand.vmem [shape: bf16[256,128], index: 4, kind: output, shape index: {}]
  %s5 = sld [smem:[#allocation0]]
  $region49: #{_dqn_forward_impl.1} parent=0
    _
  %s7 = ssub.s32 1, %s5
  %s8 = scalar_select 0, %s7, %s5
  loop: start=0, step=1, limit=4
  $region2: #{_dqn_forward_impl.1} parent=0 // loop_pre_header
    _
  $region3: #{_dqn_forward_impl.1} parent=0 // loop_header
    %s10 = sphi 0, %s14
    %p11 = scmp.ge.s32.totalorder %s10, 4
    %s20 = sphi 0, %s22
    %s23 = sphi 0, %s20
    %s24 = sphi 0, %s23
    %s40 = sphi 0, %s24
    %s44 = sphi 0, %s44
    %s46 = sphi 0, %s44
    %s47 = sphi 0, %s46
    %s61 = sphi 0, %s47
    %s65 = sphi 0, %s65
    %s67 = sphi 0, %s65
    %s68 = sphi 0, %s67
    %s82 = sphi 0, %s68
    %s86 = sphi 0, %s86
    %s88 = sphi 0, %s86
    %s89 = sphi 0, %s88
    %s103 = sphi 0, %s89
    %s109 = sphi 0, %s111
    %s112 = sphi 0, %s109
    %s113 = sphi 0, %s112
    %s129 = sphi 0, %s113
  $region4: #{_dqn_forward_impl.1} parent=0 // loop_header_branch
    %13 = sbr.rel (%p11) target = $region8
  $region5: #{_dqn_forward_impl.1} parent=0 // loop_body
    %s15 = ssub.s32 %s10, 1
    %s16 = ssub.s32 %s10, 2
    %s17 = sadd.s32 %s10, 1
    %s18 = ssub.s32 %s10, %s17
    %p19 = scmp.eq.s32.totalorder %s18, 0
    %s21 = sadd.s32 %s20, 1
    %s22 = scalar_select %p19, %s20, %s21
    %p25 = pneg %p19
    %p26 = scmp.eq.s32.totalorder %s10, 1
    %p27 = por %p25, %p26
    %p28 = scmp.ne.s32.totalorder %s20, %s23
    %p29 = scmp.eq.s32.totalorder %s10, 0
    %p30 = por %p28, %p29
    %p31 = scmp.ne.s32.totalorder %s20, %s23
    %p32 = scmp.eq.s32.totalorder %s15, 1
    %p33 = por %p31, %p32
    %p34 = scmp.ne.s32.totalorder %s23, %s24
    %p35 = scmp.eq.s32.totalorder %s15, 0
    %p36 = por %p34, %p35
    %p37 = scmp.ne.s32.totalorder %s23, %s24
    %p38 = scmp.eq.s32.totalorder %s16, 1
    %p39 = por %p37, %p38
    %p41 = scmp.ne.s32.totalorder %s24, %s40
    %p42 = scmp.eq.s32.totalorder %s16, 0
    %p43 = por %p41, %p42
    %s45 = sadd.s32 %s44, 1
    %p48 = scmp.eq.s32.totalorder %s10, 1
    %p49 = scmp.ne.s32.totalorder %s44, %s46
    %p50 = scmp.eq.s32.totalorder %s10, 0
    %p51 = por %p49, %p50
    %p52 = scmp.ne.s32.totalorder %s44, %s46
    %p53 = scmp.eq.s32.totalorder %s15, 1
    %p54 = por %p52, %p53
    %p55 = scmp.ne.s32.totalorder %s46, %s47
    %p56 = scmp.eq.s32.totalorder %s15, 0
    %p57 = por %p55, %p56
    %p58 = scmp.ne.s32.totalorder %s46, %s47
    %p59 = scmp.eq.s32.totalorder %s16, 1
    %p60 = por %p58, %p59
    %p62 = scmp.ne.s32.totalorder %s47, %s61
    %p63 = scmp.eq.s32.totalorder %s16, 0
    %p64 = por %p62, %p63
    %s66 = sadd.s32 %s65, 1
    %p69 = scmp.eq.s32.totalorder %s10, 1
    %p70 = scmp.ne.s32.totalorder %s65, %s67
    %p71 = scmp.eq.s32.totalorder %s10, 0
    %p72 = por %p70, %p71
    %p73 = scmp.ne.s32.totalorder %s65, %s67
    %p74 = scmp.eq.s32.totalorder %s15, 1
    %p75 = por %p73, %p74
    %p76 = scmp.ne.s32.totalorder %s67, %s68
    %p77 = scmp.eq.s32.totalorder %s15, 0
    %p78 = por %p76, %p77
    %p79 = scmp.ne.s32.totalorder %s67, %s68
    %p80 = scmp.eq.s32.totalorder %s16, 1
    %p81 = por %p79, %p80
    %p83 = scmp.ne.s32.totalorder %s68, %s82
    %p84 = scmp.eq.s32.totalorder %s16, 0
    %p85 = por %p83, %p84
    %s87 = sadd.s32 %s86, 1
    %p90 = scmp.eq.s32.totalorder %s10, 1
    %p91 = scmp.ne.s32.totalorder %s86, %s88
    %p92 = scmp.eq.s32.totalorder %s10, 0
    %p93 = por %p91, %p92
    %p94 = scmp.ne.s32.totalorder %s86, %s88
    %p95 = scmp.eq.s32.totalorder %s15, 1
    %p96 = por %p94, %p95
    %p97 = scmp.ne.s32.totalorder %s88, %s89
    %p98 = scmp.eq.s32.totalorder %s15, 0
    %p99 = por %p97, %p98
    %p100 = scmp.ne.s32.totalorder %s88, %s89
    %p101 = scmp.eq.s32.totalorder %s16, 1
    %p102 = por %p100, %p101
    %p104 = scmp.ne.s32.totalorder %s89, %s103
    %p105 = scmp.eq.s32.totalorder %s16, 0
    %p106 = por %p104, %p105
    %s107 = ssub.s32 %s10, %s17
    %p108 = scmp.eq.s32.totalorder %s107, 0
    %s110 = sadd.s32 %s109, 1
    %s111 = scalar_select %p108, %s109, %s110
    %p114 = pneg %p108
    %p115 = scmp.eq.s32.totalorder %s10, 1
    %p116 = por %p114, %p115
    %p117 = scmp.ne.s32.totalorder %s109, %s112
    %p118 = scmp.eq.s32.totalorder %s10, 0
    %p119 = por %p117, %p118
    %p120 = scmp.ne.s32.totalorder %s109, %s112
    %p121 = scmp.eq.s32.totalorder %s15, 1
    %p122 = por %p120, %p121
    %p123 = scmp.ne.s32.totalorder %s112, %s113
    %p124 = scmp.eq.s32.totalorder %s15, 0
    %p125 = por %p123, %p124
    %p126 = scmp.ne.s32.totalorder %s112, %s113
    %p127 = scmp.eq.s32.totalorder %s16, 1
    %p128 = por %p126, %p127
    %p130 = scmp.ne.s32.totalorder %s113, %s129
    %p131 = scmp.eq.s32.totalorder %s16, 0
    %p132 = por %p130, %p131
    %p133 = scmp.le.s32.totalorder 1, %s10
    %p134 = scmp.lt.s32.totalorder %s10, 3
    %p135 = pnand %p133, %p134
    %p136 = pneg %p135
    // Predicated region
    $region9: #{_dqn_forward_impl.1} parent=5 // pred_check
      _
    $region10: #{_dqn_forward_impl.1} parent=5 // pred_check_branch
      %138 = sbr.rel (%p135) target = $region12
    $region11: #{_dqn_forward_impl.1} parent=5 // pred_region
      %s139 = ssub.s32 %s10, 1
      // Predicated region
      $region13: #{_dqn_forward_impl.1} parent=11 // pred_check
        %p140 = pneg %p57
      $region14: #{_dqn_forward_impl.1} parent=11 // pred_check_branch
        %142 = sbr.rel (%p140) target = $region16
      $region15: #{_dqn_forward_impl.1} parent=11 // pred_region
        _
      $region16: #{_dqn_forward_impl.1} parent=11 // pred_fallthru
        _
      // Predicated region
      $region17: #{_dqn_forward_impl.1} parent=11 // pred_check
        %p143 = pneg %p78
      $region18: #{_dqn_forward_impl.1} parent=11 // pred_check_branch
        %145 = sbr.rel (%p143) target = $region20
      $region19: #{_dqn_forward_impl.1} parent=11 // pred_region
        _
      $region20: #{_dqn_forward_impl.1} parent=11 // pred_fallthru
        _
      // Predicated region
      $region21: #{_dqn_forward_impl.1} parent=11 // pred_check
        %p146 = pneg %p99
      $region22: #{_dqn_forward_impl.1} parent=11 // pred_check_branch
        %148 = sbr.rel (%p146) target = $region24
      $region23: #{_dqn_forward_impl.1} parent=11 // pred_region
        _
      $region24: #{_dqn_forward_impl.1} parent=11 // pred_fallthru
        _
    $region12: #{_dqn_forward_impl.1} parent=5 // pred_fallthru
      _
    %p149 = scmp.lt.s32.totalorder %s10, 2
    // Predicated region
    $region25: #{_dqn_forward_impl.1} parent=5 // pred_check
      %p150 = pneg %p149
    $region26: #{_dqn_forward_impl.1} parent=5 // pred_check_branch
      %152 = sbr.rel (%p150) target = $region28
    $region27: #{_dqn_forward_impl.1} parent=5 // pred_region
      // Predicated region
      $region29: #{_dqn_forward_impl.1} parent=27 // pred_check
        %p153 = pneg %p30
      $region30: #{_dqn_forward_impl.1} parent=27 // pred_check_branch
        %155 = sbr.rel (%p153) target = $region32
      $region31: #{_dqn_forward_impl.1} parent=27 // pred_region
        %s156 = smul.u32 16, %s10
        %p157 = scmp.lt.s32.totalorder %s156, 31
        %s158 = scalar_select %p157, %s156, 31
        %s159 = smul.addr %s158, 8
        %s160 = scalar_lea.vmem %s0, %s159
        %s161 = smul.u32 16, %s10
      $region32: #{_dqn_forward_impl.1} parent=27 // pred_fallthru
        _
    $region28: #{_dqn_forward_impl.1} parent=5 // pred_fallthru
      _
    %p162 = scmp.le.s32.totalorder 1, %s10
    %p163 = scmp.lt.s32.totalorder %s10, 3
    %p164 = pnand %p162, %p163
    %p165 = pneg %p164
    // Predicated region
    $region33: #{_dqn_forward_impl.1} parent=5 // pred_check
      _
    $region34: #{_dqn_forward_impl.1} parent=5 // pred_check_branch
      %167 = sbr.rel (%p164) target = $region36
    $region35: #{_dqn_forward_impl.1} parent=5 // pred_region
      %s168 = ssub.s32 %s10, 1
      %s169 = smul.u32 16, %s15
      %p170 = scmp.lt.s32.totalorder %s169, 31
      %s171 = scalar_select %p170, %s169, 31
      %s172 = smul.addr %s171, 8
      %s173 = scalar_lea.vmem %s0, %s172
      %p174 = pneg %p36
      %p175 = pneg %p33
      %p176 = pneg %p57
      %p177 = pneg %p54
      %p178 = pneg %p78
      %p179 = pneg %p75
      %p180 = pneg %p99
      %p181 = pneg %p96
      %p182 = pneg %p125
      %p183 = pneg %p122
      %s184 = smul.u32 16, %s15
      %p185 = scmp.lt.s32.totalorder %s184, 31
      %s186 = scalar_select %p185, %s184, 31
      %s187 = smul.addr %s186, 4
      %s188 = scalar_lea.vmem %s4, %s187
      %s189 = smul.u32 16, %s15
      %p190 = scmp.lt.s32.totalorder %s189, 31
      %s191 = scalar_select %p190, %s189, 31
      %s192 = smul.addr %s191, 8
      %s193 = scalar_lea.vmem %s0, %s192
      %s194 = smul.u32 16, %s15
      %s195 = smul.u32 16, %s15
      %p196 = scmp.lt.s32.totalorder %s195, 31
      %s197 = scalar_select %p196, %s195, 31
      %s198 = smul.addr %s197, 4
      %s199 = scalar_lea.vmem %s4, %s198
      %s200 = smul.u32 16, %s15
      %v202 = vld [vmem:[%s193] sm:$0xff]
      %v203 = vld [vmem:[%s193 + $0x8] sm:$0xff]
      %v204 = vld [vmem:[%s193 + $0x10] sm:$0xff]
      %v205 = vld [vmem:[%s193 + $0x18] sm:$0xff]
      %v206 = vld [vmem:[%s193 + $0x20] sm:$0xff]
      %v207 = vld [vmem:[%s193 + $0x28] sm:$0xff]
      %v208 = vld [vmem:[%s193 + $0x30] sm:$0xff]
      %v209 = vld [vmem:[%s193 + $0x38] sm:$0xff]
      %v210 = vld [vmem:[%s193 + $0x40] sm:$0xff]
      %v211 = vld [vmem:[%s193 + $0x48] sm:$0xff]
      %v212 = vld [vmem:[%s193 + $0x50] sm:$0xff]
      %v213 = vld [vmem:[%s193 + $0x58] sm:$0xff]
      %v214 = vld [vmem:[%s193 + $0x60] sm:$0xff]
      %v215 = vld [vmem:[%s193 + $0x68] sm:$0xff]
      %v216 = vld [vmem:[%s193 + $0x70] sm:$0xff]
      %v217 = vld [vmem:[%s193 + $0x78] sm:$0xff]
      %v218 = vpack.c.bf16 %v203, %v202
      %v219 = vpack.c.bf16 %v205, %v204
      %v220 = vpack.c.bf16 %v207, %v206
      %v221 = vpack.c.bf16 %v209, %v208
      %v222 = vpack.c.bf16 %v211, %v210
      %v223 = vpack.c.bf16 %v213, %v212
      %v224 = vpack.c.bf16 %v215, %v214
      %v225 = vpack.c.bf16 %v217, %v216
      %v226 = vld [vmem:[%s1] sm:$0xf]
      %v227 = vld [vmem:[%s3] sm:$0x1]
      %v229 = vlaneseq
      %v230 = vshrl.u32 %v229, 7
      %v231 = vsub.s32 0, %v230
      %v232 = vrot.slane %v227, %v231
      %vm234 = vcmask 64512
      %v236 = vsel %vm234, %v218, 0
      %v239 = vsel %vm234, %v219, 0
      %v242 = vsel %vm234, %v220, 0
      %v245 = vsel %vm234, %v221, 0
      %v248 = vsel %vm234, %v222, 0
      %v251 = vsel %vm234, %v223, 0
      %v254 = vsel %vm234, %v224, 0
      %v257 = vsel %vm234, %v225, 0
      %vm259 = vcmask 1043456
      %v261 = vsel %vm259, %v226, 0
      %263 = vmatprep.subr.bf16.mxu0 0
      %264 = vmatpush1.bf16.msra.mxu0 0
      %265 = vmatprep.subr.bf16.mxu0 0
      %266 = vmatpush1.bf16.msra.mxu0 0
      %267 = vmatprep.subr.bf16.mxu0 0
      %268 = vmatpush1.bf16.msra.mxu0 0
      %269 = vmatprep.subr.bf16.mxu0 0
      %270 = vmatpush1.bf16.msra.mxu0 0
      %271 = vmatprep.subr.bf16.mxu0 0
      %272 = vmatpush1.bf16.msra.mxu0 0
      %273 = vmatprep.subr.bf16.mxu0 0
      %274 = vmatpush1.bf16.msra.mxu0 0
      %275 = vmatprep.subr.bf16.mxu0 0
      %276 = vmatpush1.bf16.msra.mxu0 0
      %277 = vmatprep.subr.bf16.mxu0 0
      %278 = vmatpush1.bf16.msra.mxu0 %v261
      %279 = vmatprep.subr.bf16.mxu0 0
      %280 = vmatpush2.bf16.msra.mxu0 0
      %281 = vmatprep.subr.bf16.mxu0 0
      %282 = vmatpush2.bf16.msra.mxu0 0
      %283 = vmatprep.subr.bf16.mxu0 0
      %284 = vmatpush2.bf16.msra.mxu0 0
      %285 = vmatprep.subr.bf16.mxu0 0
      %286 = vmatpush2.bf16.msra.mxu0 0
      %287 = vmatprep.subr.bf16.mxu0 0
      %288 = vmatpush2.bf16.msra.mxu0 0
      %289 = vmatprep.subr.bf16.mxu0 0
      %290 = vmatpush2.bf16.msra.mxu0 0
      %291 = vmatprep.subr.bf16.mxu0 0
      %292 = vmatpush2.bf16.msra.mxu0 0
      %293 = vmatprep.subr.bf16.mxu0 0
      %294 = vmatpush2.bf16.msra.mxu0 0
      %295 = vmatprep.mubr.bf16.mxu0 0
      %296 = vmatmul.mubr.bf16.gmra.mxu0 %v236
      %v297 = vpop.f32.mrf.mxu0
      %v298 = vadd.f32 %v232, %v297
      %v299 = vpop.f32.mrf.mxu0
      %v300 = vpop.f32.mrf.mxu0
      %v301 = vadd.f32 %v232, %v300
      %v302 = vpop.f32.mrf.mxu0
      %303 = vmatprep.mubr.bf16.mxu0 0
      %304 = vmatmul.mubr.bf16.gmra.mxu0 %v239
      %v305 = vpop.f32.mrf.mxu0
      %v306 = vadd.f32 %v232, %v305
      %v307 = vpop.f32.mrf.mxu0
      %v308 = vpop.f32.mrf.mxu0
      %v309 = vadd.f32 %v232, %v308
      %v310 = vpop.f32.mrf.mxu0
      %311 = vmatprep.mubr.bf16.mxu0 0
      %312 = vmatmul.mubr.bf16.gmra.mxu0 %v242
      %v313 = vpop.f32.mrf.mxu0
      %v314 = vadd.f32 %v232, %v313
      %v315 = vpop.f32.mrf.mxu0
      %v316 = vpop.f32.mrf.mxu0
      %v317 = vadd.f32 %v232, %v316
      %v318 = vpop.f32.mrf.mxu0
      %319 = vmatprep.mubr.bf16.mxu0 0
      %320 = vmatmul.mubr.bf16.gmra.mxu0 %v245
      %v321 = vpop.f32.mrf.mxu0
      %v322 = vadd.f32 %v232, %v321
      %v323 = vpop.f32.mrf.mxu0
      %v324 = vpop.f32.mrf.mxu0
      %v325 = vadd.f32 %v232, %v324
      %v326 = vpop.f32.mrf.mxu0
      %327 = vmatprep.mubr.bf16.mxu0 0
      %328 = vmatmul.mubr.bf16.gmra.mxu0 %v248
      %v329 = vpop.f32.mrf.mxu0
      %v330 = vadd.f32 %v232, %v329
      %v331 = vpop.f32.mrf.mxu0
      %v332 = vpop.f32.mrf.mxu0
      %v333 = vadd.f32 %v232, %v332
      %v334 = vpop.f32.mrf.mxu0
      %335 = vmatprep.mubr.bf16.mxu0 0
      %336 = vmatmul.mubr.bf16.gmra.mxu0 %v251
      %v337 = vpop.f32.mrf.mxu0
      %v338 = vadd.f32 %v232, %v337
      %v339 = vpop.f32.mrf.mxu0
      %v340 = vpop.f32.mrf.mxu0
      %v341 = vadd.f32 %v232, %v340
      %v342 = vpop.f32.mrf.mxu0
      %343 = vmatprep.mubr.bf16.mxu0 0
      %344 = vmatmul.mubr.bf16.gmra.mxu0 %v254
      %v345 = vpop.f32.mrf.mxu0
      %v346 = vadd.f32 %v232, %v345
      %v347 = vpop.f32.mrf.mxu0
      %v348 = vpop.f32.mrf.mxu0
      %v349 = vadd.f32 %v232, %v348
      %v350 = vpop.f32.mrf.mxu0
      %351 = vmatprep.mubr.bf16.mxu0 0
      %352 = vmatmul.mubr.bf16.gmra.mxu0 %v257
      %v353 = vpop.f32.mrf.mxu0
      %v354 = vadd.f32 %v232, %v353
      %v355 = vpop.f32.mrf.mxu0
      %v356 = vpop.f32.mrf.mxu0
      %v357 = vadd.f32 %v232, %v356
      %v358 = vpop.f32.mrf.mxu0
      %359 = vdwg.mxu0
      %v360 = vmax.f32 %v298, 0.0
      %v361 = vmax.f32 %v301, 0.0
      %v362 = vmax.f32 %v306, 0.0
      %v363 = vmax.f32 %v309, 0.0
      %v364 = vmax.f32 %v314, 0.0
      %v365 = vmax.f32 %v317, 0.0
      %v366 = vmax.f32 %v322, 0.0
      %v367 = vmax.f32 %v325, 0.0
      %v368 = vmax.f32 %v330, 0.0
      %v369 = vmax.f32 %v333, 0.0
      %v370 = vmax.f32 %v338, 0.0
      %v371 = vmax.f32 %v341, 0.0
      %v372 = vmax.f32 %v346, 0.0
      %v373 = vmax.f32 %v349, 0.0
      %v374 = vmax.f32 %v354, 0.0
      %v375 = vmax.f32 %v357, 0.0
      %v376 = vpack.c.bf16 %v361, %v360
      %v377 = vpack.c.bf16 %v363, %v362
      %v378 = vpack.c.bf16 %v365, %v364
      %v379 = vpack.c.bf16 %v367, %v366
      %v380 = vpack.c.bf16 %v369, %v368
      %v381 = vpack.c.bf16 %v371, %v370
      %v382 = vpack.c.bf16 %v373, %v372
      %v383 = vpack.c.bf16 %v375, %v374
      %v384 = vld [vmem:[%s2] sm:$0xf]
      %v385 = vld [vmem:[%s2 + $0x4] sm:$0xf]
      %v386 = vld [vmem:[%s2 + $0x8] sm:$0xf]
      %v387 = vld [vmem:[%s2 + $0xc] sm:$0xf]
      %v388 = vld [vmem:[%s2 + $0x10] sm:$0xf]
      %v389 = vld [vmem:[%s2 + $0x14] sm:$0xf]
      %v390 = vld [vmem:[%s2 + $0x18] sm:$0xf]
      %v391 = vld [vmem:[%s2 + $0x1c] sm:$0xf]
      %v392 = vld [vmem:[%s2 + $0x20] sm:$0xf]
      %v393 = vld [vmem:[%s2 + $0x24] sm:$0xf]
      %v394 = vld [vmem:[%s2 + $0x28] sm:$0xf]
      %v395 = vld [vmem:[%s2 + $0x2c] sm:$0xf]
      %v396 = vld [vmem:[%s2 + $0x30] sm:$0xf]
      %v397 = vld [vmem:[%s2 + $0x34] sm:$0xf]
      %v398 = vld [vmem:[%s2 + $0x38] sm:$0xf]
      %v399 = vld [vmem:[%s2 + $0x3c] sm:$0xf]
      %s400 = scalar_lea.vmem %s3, 1
      %v401 = vld [vmem:[%s400] sm:$0x1]
      %v403 = vlaneseq
      %v404 = vshrl.u32 %v403, 7
      %v405 = vsub.s32 0, %v404
      %v406 = vrot.slane %v401, %v405
      %v424 = vunpack.c.l.b16 %v384
      %v425 = vunpack.c.l.b16 %v385
      %v426 = vunpack.c.l.b16 %v386
      %v427 = vunpack.c.l.b16 %v387
      %v428 = vunpack.c.l.b16 %v388
      %v429 = vunpack.c.l.b16 %v389
      %v430 = vunpack.c.l.b16 %v390
      %v431 = vunpack.c.l.b16 %v391
      %v432 = vunpack.c.l.b16 %v392
      %v433 = vunpack.c.l.b16 %v393
      %v434 = vunpack.c.l.b16 %v394
      %v435 = vunpack.c.l.b16 %v395
      %v436 = vunpack.c.l.b16 %v396
      %v437 = vunpack.c.l.b16 %v397
      %v438 = vunpack.c.l.b16 %v398
      %v439 = vunpack.c.l.b16 %v399
      %v440 = vpack.c.b16 %v425, %v424
      %v441 = vpack.c.b16 %v427, %v426
      %v442 = vpack.c.b16 %v429, %v428
      %v443 = vpack.c.b16 %v431, %v430
      %v444 = vpack.c.b16 %v433, %v432
      %v445 = vpack.c.b16 %v435, %v434
      %v446 = vpack.c.b16 %v437, %v436
      %v447 = vpack.c.b16 %v439, %v438
      %456 = vmatprep.subr.bf16.mxu0 0
      %457 = vmatpush1.bf16.msra.mxu0 %v447
      %458 = vmatprep.subr.bf16.mxu0 0
      %459 = vmatpush1.bf16.msra.mxu0 %v446
      %460 = vmatprep.subr.bf16.mxu0 0
      %461 = vmatpush1.bf16.msra.mxu0 %v445
      %462 = vmatprep.subr.bf16.mxu0 0
      %463 = vmatpush1.bf16.msra.mxu0 %v444
      %464 = vmatprep.subr.bf16.mxu0 0
      %465 = vmatpush1.bf16.msra.mxu0 %v443
      %466 = vmatprep.subr.bf16.mxu0 0
      %467 = vmatpush1.bf16.msra.mxu0 %v442
      %468 = vmatprep.subr.bf16.mxu0 0
      %469 = vmatpush1.bf16.msra.mxu0 %v441
      %470 = vmatprep.subr.bf16.mxu0 0
      %471 = vmatpush1.bf16.msra.mxu0 %v440
      %472 = vmatprep.subr.bf16.mxu0 0
      %473 = vmatpush2.bf16.msra.mxu0 0
      %474 = vmatprep.subr.bf16.mxu0 0
      %475 = vmatpush2.bf16.msra.mxu0 0
      %476 = vmatprep.subr.bf16.mxu0 0
      %477 = vmatpush2.bf16.msra.mxu0 0
      %478 = vmatprep.subr.bf16.mxu0 0
      %479 = vmatpush2.bf16.msra.mxu0 0
      %480 = vmatprep.subr.bf16.mxu0 0
      %481 = vmatpush2.bf16.msra.mxu0 0
      %482 = vmatprep.subr.bf16.mxu0 0
      %483 = vmatpush2.bf16.msra.mxu0 0
      %484 = vmatprep.subr.bf16.mxu0 0
      %485 = vmatpush2.bf16.msra.mxu0 0
      %486 = vmatprep.subr.bf16.mxu0 0
      %487 = vmatpush2.bf16.msra.mxu0 0
      %488 = vmatprep.mubr.bf16.mxu0 0
      %489 = vmatmul.mubr.bf16.gmra.mxu0 %v376
      %v490 = vpop.f32.mrf.mxu0
      %v491 = vadd.f32 %v406, %v490
      %v492 = vpop.f32.mrf.mxu0
      %v493 = vpop.f32.mrf.mxu0
      %v494 = vadd.f32 %v406, %v493
      %v495 = vpop.f32.mrf.mxu0
      %496 = vmatprep.mubr.bf16.mxu0 0
      %497 = vmatmul.mubr.bf16.gmra.mxu0 %v377
      %v498 = vpop.f32.mrf.mxu0
      %v499 = vadd.f32 %v406, %v498
      %v500 = vpop.f32.mrf.mxu0
      %v501 = vpop.f32.mrf.mxu0
      %v502 = vadd.f32 %v406, %v501
      %v503 = vpop.f32.mrf.mxu0
      %504 = vmatprep.mubr.bf16.mxu0 0
      %505 = vmatmul.mubr.bf16.gmra.mxu0 %v378
      %v506 = vpop.f32.mrf.mxu0
      %v507 = vadd.f32 %v406, %v506
      %v508 = vpop.f32.mrf.mxu0
      %v509 = vpop.f32.mrf.mxu0
      %v510 = vadd.f32 %v406, %v509
      %v511 = vpop.f32.mrf.mxu0
      %512 = vmatprep.mubr.bf16.mxu0 0
      %513 = vmatmul.mubr.bf16.gmra.mxu0 %v379
      %v514 = vpop.f32.mrf.mxu0
      %v515 = vadd.f32 %v406, %v514
      %v516 = vpop.f32.mrf.mxu0
      %v517 = vpop.f32.mrf.mxu0
      %v518 = vadd.f32 %v406, %v517
      %v519 = vpop.f32.mrf.mxu0
      %520 = vmatprep.mubr.bf16.mxu0 0
      %521 = vmatmul.mubr.bf16.gmra.mxu0 %v380
      %v522 = vpop.f32.mrf.mxu0
      %v523 = vadd.f32 %v406, %v522
      %v524 = vpop.f32.mrf.mxu0
      %v525 = vpop.f32.mrf.mxu0
      %v526 = vadd.f32 %v406, %v525
      %v527 = vpop.f32.mrf.mxu0
      %528 = vmatprep.mubr.bf16.mxu0 0
      %529 = vmatmul.mubr.bf16.gmra.mxu0 %v381
      %v530 = vpop.f32.mrf.mxu0
      %v531 = vadd.f32 %v406, %v530
      %v532 = vpop.f32.mrf.mxu0
      %v533 = vpop.f32.mrf.mxu0
      %v534 = vadd.f32 %v406, %v533
      %v535 = vpop.f32.mrf.mxu0
      %536 = vmatprep.mubr.bf16.mxu0 0
      %537 = vmatmul.mubr.bf16.gmra.mxu0 %v382
      %v538 = vpop.f32.mrf.mxu0
      %v539 = vadd.f32 %v406, %v538
      %v540 = vpop.f32.mrf.mxu0
      %v541 = vpop.f32.mrf.mxu0
      %v542 = vadd.f32 %v406, %v541
      %v543 = vpop.f32.mrf.mxu0
      %544 = vmatprep.mubr.bf16.mxu0 0
      %545 = vmatmul.mubr.bf16.gmra.mxu0 %v383
      %v546 = vpop.f32.mrf.mxu0
      %v547 = vadd.f32 %v406, %v546
      %v548 = vpop.f32.mrf.mxu0
      %v549 = vpop.f32.mrf.mxu0
      %v550 = vadd.f32 %v406, %v549
      %v551 = vpop.f32.mrf.mxu0
      %552 = vdwg.mxu0
      %v553 = vmax.f32 %v491, 0.0
      %v554 = vmax.f32 %v494, 0.0
      %v555 = vmax.f32 %v499, 0.0
      %v556 = vmax.f32 %v502, 0.0
      %v557 = vmax.f32 %v507, 0.0
      %v558 = vmax.f32 %v510, 0.0
      %v559 = vmax.f32 %v515, 0.0
      %v560 = vmax.f32 %v518, 0.0
      %v561 = vmax.f32 %v523, 0.0
      %v562 = vmax.f32 %v526, 0.0
      %v563 = vmax.f32 %v531, 0.0
      %v564 = vmax.f32 %v534, 0.0
      %v565 = vmax.f32 %v539, 0.0
      %v566 = vmax.f32 %v542, 0.0
      %v567 = vmax.f32 %v547, 0.0
      %v568 = vmax.f32 %v550, 0.0
      %v569 = vpack.c.bf16 %v554, %v553
      %v570 = vpack.c.bf16 %v556, %v555
      %v571 = vpack.c.bf16 %v558, %v557
      %v572 = vpack.c.bf16 %v560, %v559
      %v573 = vpack.c.bf16 %v562, %v561
      %v574 = vpack.c.bf16 %v564, %v563
      %v575 = vpack.c.bf16 %v566, %v565
      %v576 = vpack.c.bf16 %v568, %v567
      %s577 = scalar_lea.vmem %s2, 64
      %v578 = vld [vmem:[%s577] sm:$0xf]
      %v579 = vld [vmem:[%s577 + $0x4] sm:$0xf]
      %v580 = vld [vmem:[%s577 + $0x8] sm:$0xf]
      %v581 = vld [vmem:[%s577 + $0xc] sm:$0xf]
      %v582 = vld [vmem:[%s577 + $0x10] sm:$0xf]
      %v583 = vld [vmem:[%s577 + $0x14] sm:$0xf]
      %v584 = vld [vmem:[%s577 + $0x18] sm:$0xf]
      %v585 = vld [vmem:[%s577 + $0x1c] sm:$0xf]
      %v586 = vld [vmem:[%s577 + $0x20] sm:$0xf]
      %v587 = vld [vmem:[%s577 + $0x24] sm:$0xf]
      %v588 = vld [vmem:[%s577 + $0x28] sm:$0xf]
      %v589 = vld [vmem:[%s577 + $0x2c] sm:$0xf]
      %v590 = vld [vmem:[%s577 + $0x30] sm:$0xf]
      %v591 = vld [vmem:[%s577 + $0x34] sm:$0xf]
      %v592 = vld [vmem:[%s577 + $0x38] sm:$0xf]
      %v593 = vld [vmem:[%s577 + $0x3c] sm:$0xf]
      %s594 = scalar_lea.vmem %s3, 2
      %v595 = vld [vmem:[%s594] sm:$0x1]
      %v597 = vlaneseq
      %v598 = vshrl.u32 %v597, 7
      %v599 = vsub.s32 0, %v598
      %v600 = vrot.slane %v595, %v599
      %v618 = vunpack.c.l.b16 %v578
      %v619 = vunpack.c.l.b16 %v579
      %v620 = vunpack.c.l.b16 %v580
      %v621 = vunpack.c.l.b16 %v581
      %v622 = vunpack.c.l.b16 %v582
      %v623 = vunpack.c.l.b16 %v583
      %v624 = vunpack.c.l.b16 %v584
      %v625 = vunpack.c.l.b16 %v585
      %v626 = vunpack.c.l.b16 %v586
      %v627 = vunpack.c.l.b16 %v587
      %v628 = vunpack.c.l.b16 %v588
      %v629 = vunpack.c.l.b16 %v589
      %v630 = vunpack.c.l.b16 %v590
      %v631 = vunpack.c.l.b16 %v591
      %v632 = vunpack.c.l.b16 %v592
      %v633 = vunpack.c.l.b16 %v593
      %v634 = vpack.c.b16 %v619, %v618
      %v635 = vpack.c.b16 %v621, %v620
      %v636 = vpack.c.b16 %v623, %v622
      %v637 = vpack.c.b16 %v625, %v624
      %v638 = vpack.c.b16 %v627, %v626
      %v639 = vpack.c.b16 %v629, %v628
      %v640 = vpack.c.b16 %v631, %v630
      %v641 = vpack.c.b16 %v633, %v632
      %650 = vmatprep.subr.bf16.mxu0 0
      %651 = vmatpush1.bf16.msra.mxu0 %v641
      %652 = vmatprep.subr.bf16.mxu0 0
      %653 = vmatpush1.bf16.msra.mxu0 %v640
      %654 = vmatprep.subr.bf16.mxu0 0
      %655 = vmatpush1.bf16.msra.mxu0 %v639
      %656 = vmatprep.subr.bf16.mxu0 0
      %657 = vmatpush1.bf16.msra.mxu0 %v638
      %658 = vmatprep.subr.bf16.mxu0 0
      %659 = vmatpush1.bf16.msra.mxu0 %v637
      %660 = vmatprep.subr.bf16.mxu0 0
      %661 = vmatpush1.bf16.msra.mxu0 %v636
      %662 = vmatprep.subr.bf16.mxu0 0
      %663 = vmatpush1.bf16.msra.mxu0 %v635
      %664 = vmatprep.subr.bf16.mxu0 0
      %665 = vmatpush1.bf16.msra.mxu0 %v634
      %666 = vmatprep.subr.bf16.mxu0 0
      %667 = vmatpush2.bf16.msra.mxu0 0
      %668 = vmatprep.subr.bf16.mxu0 0
      %669 = vmatpush2.bf16.msra.mxu0 0
      %670 = vmatprep.subr.bf16.mxu0 0
      %671 = vmatpush2.bf16.msra.mxu0 0
      %672 = vmatprep.subr.bf16.mxu0 0
      %673 = vmatpush2.bf16.msra.mxu0 0
      %674 = vmatprep.subr.bf16.mxu0 0
      %675 = vmatpush2.bf16.msra.mxu0 0
      %676 = vmatprep.subr.bf16.mxu0 0
      %677 = vmatpush2.bf16.msra.mxu0 0
      %678 = vmatprep.subr.bf16.mxu0 0
      %679 = vmatpush2.bf16.msra.mxu0 0
      %680 = vmatprep.subr.bf16.mxu0 0
      %681 = vmatpush2.bf16.msra.mxu0 0
      %682 = vmatprep.mubr.bf16.mxu0 0
      %683 = vmatmul.mubr.bf16.gmra.mxu0 %v569
      %v684 = vpop.f32.mrf.mxu0
      %v685 = vadd.f32 %v600, %v684
      %v686 = vpop.f32.mrf.mxu0
      %v687 = vpop.f32.mrf.mxu0
      %v688 = vadd.f32 %v600, %v687
      %v689 = vpop.f32.mrf.mxu0
      %690 = vmatprep.mubr.bf16.mxu0 0
      %691 = vmatmul.mubr.bf16.gmra.mxu0 %v570
      %v692 = vpop.f32.mrf.mxu0
      %v693 = vadd.f32 %v600, %v692
      %v694 = vpop.f32.mrf.mxu0
      %v695 = vpop.f32.mrf.mxu0
      %v696 = vadd.f32 %v600, %v695
      %v697 = vpop.f32.mrf.mxu0
      %698 = vmatprep.mubr.bf16.mxu0 0
      %699 = vmatmul.mubr.bf16.gmra.mxu0 %v571
      %v700 = vpop.f32.mrf.mxu0
      %v701 = vadd.f32 %v600, %v700
      %v702 = vpop.f32.mrf.mxu0
      %v703 = vpop.f32.mrf.mxu0
      %v704 = vadd.f32 %v600, %v703
      %v705 = vpop.f32.mrf.mxu0
      %706 = vmatprep.mubr.bf16.mxu0 0
      %707 = vmatmul.mubr.bf16.gmra.mxu0 %v572
      %v708 = vpop.f32.mrf.mxu0
      %v709 = vadd.f32 %v600, %v708
      %v710 = vpop.f32.mrf.mxu0
      %v711 = vpop.f32.mrf.mxu0
      %v712 = vadd.f32 %v600, %v711
      %v713 = vpop.f32.mrf.mxu0
      %714 = vmatprep.mubr.bf16.mxu0 0
      %715 = vmatmul.mubr.bf16.gmra.mxu0 %v573
      %v716 = vpop.f32.mrf.mxu0
      %v717 = vadd.f32 %v600, %v716
      %v718 = vpop.f32.mrf.mxu0
      %v719 = vpop.f32.mrf.mxu0
      %v720 = vadd.f32 %v600, %v719
      %v721 = vpop.f32.mrf.mxu0
      %722 = vmatprep.mubr.bf16.mxu0 0
      %723 = vmatmul.mubr.bf16.gmra.mxu0 %v574
      %v724 = vpop.f32.mrf.mxu0
      %v725 = vadd.f32 %v600, %v724
      %v726 = vpop.f32.mrf.mxu0
      %v727 = vpop.f32.mrf.mxu0
      %v728 = vadd.f32 %v600, %v727
      %v729 = vpop.f32.mrf.mxu0
      %730 = vmatprep.mubr.bf16.mxu0 0
      %731 = vmatmul.mubr.bf16.gmra.mxu0 %v575
      %v732 = vpop.f32.mrf.mxu0
      %v733 = vadd.f32 %v600, %v732
      %v734 = vpop.f32.mrf.mxu0
      %v735 = vpop.f32.mrf.mxu0
      %v736 = vadd.f32 %v600, %v735
      %v737 = vpop.f32.mrf.mxu0
      %738 = vmatprep.mubr.bf16.mxu0 0
      %739 = vmatmul.mubr.bf16.gmra.mxu0 %v576
      %v740 = vpop.f32.mrf.mxu0
      %v741 = vadd.f32 %v600, %v740
      %v742 = vpop.f32.mrf.mxu0
      %v743 = vpop.f32.mrf.mxu0
      %v744 = vadd.f32 %v600, %v743
      %v745 = vpop.f32.mrf.mxu0
      %746 = vdwg.mxu0
      %v747 = vpack.c.bf16 %v688, %v685
      %v748 = vpack.c.bf16 %v696, %v693
      %v749 = vpack.c.bf16 %v704, %v701
      %v750 = vpack.c.bf16 %v712, %v709
      %v751 = vpack.c.bf16 %v720, %v717
      %v752 = vpack.c.bf16 %v728, %v725
      %v753 = vpack.c.bf16 %v736, %v733
      %v754 = vpack.c.bf16 %v744, %v741
      %v763 = vunpack.c.l.b16 %v747
      %v764 = vunpack.c.h.b16 %v747
      %v765 = vunpack.c.l.b16 %v748
      %v766 = vunpack.c.h.b16 %v748
      %v767 = vunpack.c.l.b16 %v749
      %v768 = vunpack.c.h.b16 %v749
      %v769 = vunpack.c.l.b16 %v750
      %v770 = vunpack.c.h.b16 %v750
      %v771 = vunpack.c.l.b16 %v751
      %v772 = vunpack.c.h.b16 %v751
      %v773 = vunpack.c.l.b16 %v752
      %v774 = vunpack.c.h.b16 %v752
      %v775 = vunpack.c.l.b16 %v753
      %v776 = vunpack.c.h.b16 %v753
      %v777 = vunpack.c.l.b16 %v754
      %v778 = vunpack.c.h.b16 %v754
      %v779 = vpack.c.b16 %v763, %v763
      %v780 = vpack.c.b16 %v764, %v764
      %v781 = vpack.c.b16 %v765, %v765
      %v782 = vpack.c.b16 %v766, %v766
      %v783 = vpack.c.b16 %v767, %v767
      %v784 = vpack.c.b16 %v768, %v768
      %v785 = vpack.c.b16 %v769, %v769
      %v786 = vpack.c.b16 %v770, %v770
      %v787 = vpack.c.b16 %v771, %v771
      %v788 = vpack.c.b16 %v772, %v772
      %v789 = vpack.c.b16 %v773, %v773
      %v790 = vpack.c.b16 %v774, %v774
      %v791 = vpack.c.b16 %v775, %v775
      %v792 = vpack.c.b16 %v776, %v776
      %v793 = vpack.c.b16 %v777, %v777
      %v794 = vpack.c.b16 %v778, %v778
      %811 = vst [vmem:[%s199] sm:$0xf] %v779
      %812 = vst [vmem:[%s199 + $0x4] sm:$0xf] %v780
      %813 = vst [vmem:[%s199 + $0x8] sm:$0xf] %v781
      %814 = vst [vmem:[%s199 + $0xc] sm:$0xf] %v782
      %815 = vst [vmem:[%s199 + $0x10] sm:$0xf] %v783
      %816 = vst [vmem:[%s199 + $0x14] sm:$0xf] %v784
      %817 = vst [vmem:[%s199 + $0x18] sm:$0xf] %v785
      %818 = vst [vmem:[%s199 + $0x1c] sm:$0xf] %v786
      %819 = vst [vmem:[%s199 + $0x20] sm:$0xf] %v787
      %820 = vst [vmem:[%s199 + $0x24] sm:$0xf] %v788
      %821 = vst [vmem:[%s199 + $0x28] sm:$0xf] %v789
      %822 = vst [vmem:[%s199 + $0x2c] sm:$0xf] %v790
      %823 = vst [vmem:[%s199 + $0x30] sm:$0xf] %v791
      %824 = vst [vmem:[%s199 + $0x34] sm:$0xf] %v792
      %825 = vst [vmem:[%s199 + $0x38] sm:$0xf] %v793
      %826 = vst [vmem:[%s199 + $0x3c] sm:$0xf] %v794
      %s827 = smul.u32 16, %s15
      %p828 = scmp.lt.s32.totalorder %s827, 31
      %s829 = scalar_select %p828, %s827, 31
      %s830 = smul.addr %s829, 4
      %s831 = scalar_lea.vmem %s4, %s830
      // Predicated region
      $region37: #{_dqn_forward_impl.1} parent=35 // pred_check
        %p832 = pneg %p122
      $region38: #{_dqn_forward_impl.1} parent=35 // pred_check_branch
        %834 = sbr.rel (%p832) target = $region40
      $region39: #{_dqn_forward_impl.1} parent=35 // pred_region
        %s835 = smul.u32 16, %s15
      $region40: #{_dqn_forward_impl.1} parent=35 // pred_fallthru
        _
    $region36: #{_dqn_forward_impl.1} parent=5 // pred_fallthru
      _
    %p836 = scmp.le.s32.totalorder 2, %s10
    // Predicated region
    $region41: #{_dqn_forward_impl.1} parent=5 // pred_check
      %p837 = pneg %p836
    $region42: #{_dqn_forward_impl.1} parent=5 // pred_check_branch
      %839 = sbr.rel (%p837) target = $region44
    $region43: #{_dqn_forward_impl.1} parent=5 // pred_region
      %s840 = ssub.s32 %s10, 2
      // Predicated region
      $region45: #{_dqn_forward_impl.1} parent=43 // pred_check
        %p841 = pneg %p128
      $region46: #{_dqn_forward_impl.1} parent=43 // pred_check_branch
        %843 = sbr.rel (%p841) target = $region48
      $region47: #{_dqn_forward_impl.1} parent=43 // pred_region
        %s844 = smul.u32 16, %s16
        %p845 = scmp.lt.s32.totalorder %s844, 31
        %s846 = scalar_select %p845, %s844, 31
        %s847 = smul.addr %s846, 4
        %s848 = scalar_lea.vmem %s4, %s847
      $region48: #{_dqn_forward_impl.1} parent=43 // pred_fallthru
        _
    $region44: #{_dqn_forward_impl.1} parent=5 // pred_fallthru
      _
  $region6: #{_dqn_forward_impl.1} parent=0 // loop_footer
    %s14 = sadd.s32 1, %s10
  $region7: #{_dqn_forward_impl.1} parent=0 // loop_footer_branch
    %9 = sbr.rel target = $region3
  $region8: #{_dqn_forward_impl.1} parent=0 // loop_exit
    _

</llo_original>
